<compile_context>
chip_gen: v6e
topology: v6e:2x2x1
jax: 0.10.0
libtpu: 0.0.40
codegen_flags: <defaults>
</compile_context>

<pallas_src>
import functools

import jax
import jax.numpy as jnp
from jax import lax
from jax.experimental import pallas as pl
from jax.experimental.pallas import tpu as pltpu

CONF_THRESH = 0.2


def _round_up(x, m):
    return (x + m - 1) // m * m


def pred_extract_kernel(det_ref, scores_ref, probs_ref, labels_ref, keep_ref,
                        *, num_classes, target_id, conf_thresh, label_dtype):
    # det_ref block: (B, 1 + C, tn) — anchors on lanes, attribute rows on sublanes.
    det = det_ref[...]

    scores = det[:, 0:1, :]                        # objectness, (B, 1, tn)

    # Class max/argmax as a sublane-axis reduction over full vregs.  First-index
    # tie-breaking (torch.max semantics) via min over matching class indices.
    cls = det[:, 1:, :]                            # (B, C, tn)
    maxval = jnp.max(cls, axis=1, keepdims=True)   # (B, 1, tn)
    cls_idx = lax.broadcasted_iota(jnp.int32, cls.shape, 1)
    labels = jnp.min(jnp.where(cls == maxval, cls_idx, num_classes),
                     axis=1, keepdims=True)        # (B, 1, tn) int32

    scores_ref[...] = scores
    probs_ref[...] = maxval
    labels_ref[...] = labels.astype(label_dtype)

    # Elementwise part of filter_detections (confidence + target-class mask).
    keep = (scores > conf_thresh) & (labels == target_id)
    keep_ref[...] = keep.astype(jnp.int8)


def pred_extractor_channels_first(det_cf, target_class_id, tn=4096,
                                  conf_thresh=CONF_THRESH):
    """det_cf: f32[B, 1 + C, N] — row 0 objectness, rows 1..C class scores,
    anchors on the minor (lane) axis.  This is the zero-copy entry point for a
    YOLO head that already emits channels-first output."""
    B, Dt, N = det_cf.shape
    C = Dt - 1

    # Big anchor tiles amortize the ~0.35us fixed per-grid-step overhead, but
    # keep >= 2 grid steps whenever possible so v7x can shard across both TCs.
    tn = max(128, min(_round_up(tn, 128), _round_up(pl.cdiv(N, 2), 128)))
    n_blocks = pl.cdiv(N, tn)          # ragged tail handled by Pallas store masking

    label_dtype = jnp.int8 if C <= 127 else jnp.int32
    label_bytes = 1 if label_dtype == jnp.int8 else 4

    kern = functools.partial(pred_extract_kernel, num_classes=C,
                             target_id=target_class_id, conf_thresh=conf_thresh,
                             label_dtype=label_dtype)

    out_shapes = (
        jax.ShapeDtypeStruct((B, 1, N), det_cf.dtype),   # scores
        jax.ShapeDtypeStruct((B, 1, N), det_cf.dtype),   # classprobs
        jax.ShapeDtypeStruct((B, 1, N), label_dtype),    # labels
        jax.ShapeDtypeStruct((B, 1, N), jnp.int8),       # keep mask
    )
    in_specs = [pl.BlockSpec((B, Dt, tn), lambda n: (0, 0, n))]
    out_specs = tuple(pl.BlockSpec((B, 1, tn), lambda n: (0, 0, n))
                      for _ in out_shapes)

    itemsize = det_cf.dtype.itemsize
    cost = pl.CostEstimate(
        flops=3 * B * N * max(C, 1),
        transcendentals=0,
        bytes_accessed=B * Dt * N * itemsize
                       + B * N * (2 * itemsize + label_bytes + 1))

    scores, classprobs, labels, keep = pl.pallas_call(
        kern,
        out_shape=out_shapes,
        grid=(n_blocks,),
        in_specs=in_specs,
        out_specs=out_specs,
        compiler_params=pltpu.CompilerParams(
            dimension_semantics=("parallel",),
            # Permit XLA to fold a producing transpose/slice into the pallas
            # input instead of materializing it in HBM (when it supports it).
            allow_input_fusion=[True]),
        cost_estimate=cost,
    )(det_cf)

    return {"scores": scores[:, 0, :],
            "classprobs": classprobs[:, 0, :],
            "labels": labels[:, 0, :],     # int8 (torch returns int64) — documented
            "keep": keep[:, 0, :]}


def pred_extractor(detections, target_class_id, tn=4096, conf_thresh=CONF_THRESH):
    """detections: f32[B, N, 5 + C] (the layout the PyTorch module receives)."""
    B, N, D = detections.shape

    # boxes are a plain slice already in the layout the consumer wants.
    boxes = detections[..., :4]                          # (B, N, 4)

    # Channels-first view of (objectness, class...) rows.  Ideally the upstream
    # head emits [B, 5 + C, N] and calls pred_extractor_channels_first directly
    # to skip this transpose; allow_input_fusion on the pallas_call lets XLA
    # fold it into the kernel's input feed when it can.
    det_cf = jnp.transpose(detections[..., 4:], (0, 2, 1))   # (B, 1 + C, N)

    out = pred_extractor_channels_first(det_cf, target_class_id, tn=tn,
                                        conf_thresh=conf_thresh)
    out["boxes"] = boxes
    return out


def _reference(detections, target_class_id, label_dtype):
    boxes = detections[..., :4]
    scores = detections[..., 4]
    cls = detections[..., 5:]
    classprobs = jnp.max(cls, axis=-1)
    labels = jnp.argmax(cls, axis=-1).astype(label_dtype)
    keep = ((scores > CONF_THRESH) & (labels == target_class_id)).astype(jnp.int8)
    return boxes, scores, classprobs, labels, keep


if __name__ == "__main__":
    B, N, C = 2, 1200, 16          # D = 5 + C = 21; N not a multiple of the tile
    target_class_id = 3

    key = jax.random.PRNGKey(0)
    detections = jax.random.uniform(key, (B, N, 5 + C), dtype=jnp.float32)

    out = pred_extractor(detections, target_class_id)
    jax.block_until_ready(out)

    rb, rs, rp, rl, rk = _reference(detections, target_class_id,
                                    out["labels"].dtype)
    assert jnp.allclose(out["boxes"], rb)
    assert jnp.allclose(out["scores"], rs)
    assert jnp.allclose(out["classprobs"], rp)
    assert jnp.array_equal(out["labels"], rl)
    assert jnp.array_equal(out["keep"], rk)

    print("KERNEL_OK")
</pallas_src>

<mosaic_0001>
module attributes {stable_mosaic.version = 11 : i64} {
  func.func @pred_extract_kernel(%arg0: i32, %arg1: memref<2x17x640xf32, #tpu.memory_space<vmem>>, %arg2: memref<2x1x640xf32, #tpu.memory_space<vmem>>, %arg3: memref<2x1x640xf32, #tpu.memory_space<vmem>>, %arg4: memref<2x1x640xi8, #tpu.memory_space<vmem>>, %arg5: memref<2x1x640xi8, #tpu.memory_space<vmem>>) attributes {dimension_semantics = [#tpu.dimension_semantics<parallel>], iteration_bounds = array<i64: 2>, scalar_prefetch = 0 : i64, scratch_operands = 0 : i64, tpu.core_type = #tpu.core_type<tc>, window_params = [{transform_indices = @transform_0, window_bounds = array<i64: 2, 17, 640>}, {transform_indices = @transform_1, window_bounds = array<i64: 2, 1, 640>}, {transform_indices = @transform_2, window_bounds = array<i64: 2, 1, 640>}, {transform_indices = @transform_3, window_bounds = array<i64: 2, 1, 640>}, {transform_indices = @transform_4, window_bounds = array<i64: 2, 1, 640>}]} {
    %c0 = arith.constant 0 : index
    %c0_0 = arith.constant 0 : index
    %c0_1 = arith.constant 0 : index
    %0 = vector.load %arg1[%c0, %c0_0, %c0_1] : memref<2x17x640xf32, #tpu.memory_space<vmem>>, vector<2x17x640xf32>
    %1 = vector.extract_strided_slice %0 {offsets = [0, 0, 0], sizes = [2, 1, 640], strides = [1, 1, 1]} : vector<2x17x640xf32> to vector<2x1x640xf32>
    %2 = vector.extract_strided_slice %0 {offsets = [0, 1, 0], sizes = [2, 16, 640], strides = [1, 1, 1]} : vector<2x17x640xf32> to vector<2x16x640xf32>
    %cst = arith.constant dense<0xFF800000> : vector<2x640xf32>
    %3 = vector.multi_reduction <maximumf>, %2, %cst [1] : vector<2x16x640xf32> to vector<2x640xf32>
    %4 = vector.shape_cast %3 : vector<2x640xf32> to vector<2x1x640xf32>
    %5 = tpu.iota {dimensions = array<i32: 1>} : vector<2x16x640xi32>
    %6 = vector.broadcast %4 : vector<2x1x640xf32> to vector<2x16x640xf32>
    %7 = arith.cmpf oeq, %2, %6 : vector<2x16x640xf32>
    %c16_i32 = arith.constant 16 : i32
    %8 = vector.broadcast %c16_i32 : i32 to vector<2x16x640xi32>
    %9 = arith.select %7, %5, %8 : vector<2x16x640xi1>, vector<2x16x640xi32>
    %cst_2 = arith.constant dense<2147483647> : vector<2x640xi32>
    %10 = vector.multi_reduction <minsi>, %9, %cst_2 [1] : vector<2x16x640xi32> to vector<2x640xi32>
    %11 = vector.shape_cast %10 : vector<2x640xi32> to vector<2x1x640xi32>
    %c0_3 = arith.constant 0 : index
    %c0_4 = arith.constant 0 : index
    %c0_5 = arith.constant 0 : index
    %12 = vector.load %arg2[%c0_3, %c0_4, %c0_5] : memref<2x1x640xf32, #tpu.memory_space<vmem>>, vector<2x1x640xf32>
    tpu.vector_store %arg2[%c0_3, %c0_4, %c0_5], %1 {strides = array<i32>} : memref<2x1x640xf32, #tpu.memory_space<vmem>>, vector<2x1x640xf32>,
    %c0_6 = arith.constant 0 : index
    %c0_7 = arith.constant 0 : index
    %c0_8 = arith.constant 0 : index
    %13 = vector.load %arg3[%c0_6, %c0_7, %c0_8] : memref<2x1x640xf32, #tpu.memory_space<vmem>>, vector<2x1x640xf32>
    tpu.vector_store %arg3[%c0_6, %c0_7, %c0_8], %4 {strides = array<i32>} : memref<2x1x640xf32, #tpu.memory_space<vmem>>, vector<2x1x640xf32>,
    %14 = arith.trunci %11 : vector<2x1x640xi32> to vector<2x1x640xi8>
    %c0_9 = arith.constant 0 : index
    %c0_10 = arith.constant 0 : index
    %c0_11 = arith.constant 0 : index
    %15 = vector.load %arg4[%c0_9, %c0_10, %c0_11] : memref<2x1x640xi8, #tpu.memory_space<vmem>>, vector<2x1x640xi8>
    tpu.vector_store %arg4[%c0_9, %c0_10, %c0_11], %14 {strides = array<i32>} : memref<2x1x640xi8, #tpu.memory_space<vmem>>, vector<2x1x640xi8>,
    %cst_12 = arith.constant 2.000000e-01 : f32
    %16 = vector.broadcast %cst_12 : f32 to vector<2x1x640xf32>
    %17 = arith.cmpf ogt, %1, %16 : vector<2x1x640xf32>
    %c3_i32 = arith.constant 3 : i32
    %18 = vector.broadcast %c3_i32 : i32 to vector<2x1x640xi32>
    %19 = arith.cmpi eq, %11, %18 : vector<2x1x640xi32>
    %20 = arith.andi %17, %19 : vector<2x1x640xi1>
    %21 = arith.extui %20 : vector<2x1x640xi1> to vector<2x1x640xi8>
    %c0_13 = arith.constant 0 : index
    %c0_14 = arith.constant 0 : index
    %c0_15 = arith.constant 0 : index
    %22 = vector.load %arg5[%c0_13, %c0_14, %c0_15] : memref<2x1x640xi8, #tpu.memory_space<vmem>>, vector<2x1x640xi8>
    tpu.vector_store %arg5[%c0_13, %c0_14, %c0_15], %21 {strides = array<i32>} : memref<2x1x640xi8, #tpu.memory_space<vmem>>, vector<2x1x640xi8>,
    return
  }
  func.func @transform_0(%arg0: i32) -> (i32, i32, i32) {
    %c0_i32 = arith.constant 0 : i32
    %c0_i32_0 = arith.constant 0 : i32
    %c0_i32_1 = arith.constant 0 : i32
    return %c0_i32, %c0_i32_0, %arg0 : i32, i32, i32
  }
  func.func @transform_1(%arg0: i32) -> (i32, i32, i32) {
    %c0_i32 = arith.constant 0 : i32
    %c0_i32_0 = arith.constant 0 : i32
    %c0_i32_1 = arith.constant 0 : i32
    return %c0_i32, %c0_i32_0, %arg0 : i32, i32, i32
  }
  func.func @transform_2(%arg0: i32) -> (i32, i32, i32) {
    %c0_i32 = arith.constant 0 : i32
    %c0_i32_0 = arith.constant 0 : i32
    %c0_i32_1 = arith.constant 0 : i32
    return %c0_i32, %c0_i32_0, %arg0 : i32, i32, i32
  }
  func.func @transform_3(%arg0: i32) -> (i32, i32, i32) {
    %c0_i32 = arith.constant 0 : i32
    %c0_i32_0 = arith.constant 0 : i32
    %c0_i32_1 = arith.constant 0 : i32
    return %c0_i32, %c0_i32_0, %arg0 : i32, i32, i32
  }
  func.func @transform_4(%arg0: i32) -> (i32, i32, i32) {
    %c0_i32 = arith.constant 0 : i32
    %c0_i32_0 = arith.constant 0 : i32
    %c0_i32_1 = arith.constant 0 : i32
    return %c0_i32, %c0_i32_0, %arg0 : i32, i32, i32
  }
}

</mosaic_0001>

<llo_original>
// kernel: tpu_custom_call.1
$region0: #{tpu_custom_call.1}
  #allocation0 [shape = 'u32[]', space=smem, size = 0x4, offset = 0x4, fixed_abs, tag = 'smem constant byte address 0x4 - core index']
  #allocation1 [shape = 'u32[144,128]{1,0:T(1,128)}', space=vmem, size = 0x12000, scoped, tag = 'internal scratch']
  %s0 = inlined_call_operand.vmem [shape: f32[2,17,1200], index: 0, kind: input, shape index: {}]
  %s1 = inlined_call_operand.hbm [shape: f32[2,1,1200], index: 1, kind: output, shape index: {0}]
  %s2 = inlined_call_operand.hbm [shape: f32[2,1,1200], index: 2, kind: output, shape index: {1}]
  %s3 = inlined_call_operand.vmem [shape: s8[2,1,1200], index: 3, kind: output, shape index: {2}]
  %s4 = inlined_call_operand.vmem [shape: s8[2,1,1200], index: 4, kind: output, shape index: {3}]
  %5 = xla_tuple %s1, %s2, %s3, %s4
  %s6 = sld [smem:[#allocation0]]
  $region158: #{tpu_custom_call.1} parent=0
    _
  %s8 = ssub.s32 1, %s6
  %s9 = scalar_select 0, %s8, %s6
  $region1: #{tpu_custom_call.1} parent=0
    #allocation2 [shape = 'u8[245760]{0}', space=vmem, size = 0x3c000, scoped, tag = 'input window, operand 0']
    #allocation3 [shape = 'u8[10240]{0}', space=vmem, size = 0x2800, scoped, tag = 'output window, operand 0']
    #allocation4 [shape = 's32[2]{0}', space=sflag, size = 0x8, scoped, tag = 'scoped memory for tpu_custom_call.1']
    #allocation5 [shape = 'u8[10240]{0}', space=vmem, size = 0x2800, scoped, tag = 'output window, operand 1']
    #allocation6 [shape = 's32[2]{0}', space=sflag, size = 0x8, scoped, tag = 'scoped memory for tpu_custom_call.1']
    #allocation7 [shape = 'u8[10240]{0}', space=vmem, size = 0x2800, scoped, tag = 'output window, operand 2']
    #allocation8 [shape = 'u8[10240]{0}', space=vmem, size = 0x2800, scoped, tag = 'output window, operand 3']
    %10 = vsyncpa [#allocation4], 0
    %s11 = scalar_lea.sflag [#allocation4], 1
    %12 = vsyncpa %s11, 0
    %13 = vsyncpa [#allocation6], 0
    %s14 = scalar_lea.sflag [#allocation6], 1
    %15 = vsyncpa %s14, 0
    loop: start=0, step=1, limit=4
    $region2: #{tpu_custom_call.1} parent=1 // loop_pre_header
      _
    $region3: #{tpu_custom_call.1} parent=1 // loop_header
      %s17 = sphi 0, %s21
      %p18 = scmp.ge.s32.totalorder %s17, 4
      %s27 = sphi 0, %s29
      %s30 = sphi 0, %s27
      %s31 = sphi 0, %s30
      %s47 = sphi 0, %s31
      %s53 = sphi 0, %s55
      %s56 = sphi 0, %s53
      %s57 = sphi 0, %s56
      %s73 = sphi 0, %s57
      %s79 = sphi 0, %s81
      %s82 = sphi 0, %s79
      %s83 = sphi 0, %s82
      %s99 = sphi 0, %s83
      %s105 = sphi 0, %s107
      %s108 = sphi 0, %s105
      %s109 = sphi 0, %s108
      %s125 = sphi 0, %s109
      %s131 = sphi 0, %s133
      %s134 = sphi 0, %s131
      %s135 = sphi 0, %s134
      %s151 = sphi 0, %s135
    $region4: #{tpu_custom_call.1} parent=1 // loop_header_branch
      %20 = sbr.rel (%p18) target = $region8
    $region5: #{tpu_custom_call.1} parent=1 // loop_body
      %s22 = ssub.s32 %s17, 1
      %s23 = ssub.s32 %s17, 2
      %s24 = sadd.s32 %s17, 1
      %s25 = ssub.s32 %s17, %s24
      %p26 = scmp.eq.s32.totalorder %s25, 0
      %s28 = sadd.s32 %s27, 1
      %s29 = scalar_select %p26, %s27, %s28
      %p32 = pneg %p26
      %p33 = scmp.eq.s32.totalorder %s17, 1
      %p34 = por %p32, %p33
      %p35 = scmp.ne.s32.totalorder %s27, %s30
      %p36 = scmp.eq.s32.totalorder %s17, 0
      %p37 = por %p35, %p36
      %p38 = scmp.ne.s32.totalorder %s27, %s30
      %p39 = scmp.eq.s32.totalorder %s22, 1
      %p40 = por %p38, %p39
      %p41 = scmp.ne.s32.totalorder %s30, %s31
      %p42 = scmp.eq.s32.totalorder %s22, 0
      %p43 = por %p41, %p42
      %p44 = scmp.ne.s32.totalorder %s30, %s31
      %p45 = scmp.eq.s32.totalorder %s23, 1
      %p46 = por %p44, %p45
      %p48 = scmp.ne.s32.totalorder %s31, %s47
      %p49 = scmp.eq.s32.totalorder %s23, 0
      %p50 = por %p48, %p49
      %s51 = ssub.s32 %s17, %s24
      %p52 = scmp.eq.s32.totalorder %s51, 0
      %s54 = sadd.s32 %s53, 1
      %s55 = scalar_select %p52, %s53, %s54
      %p58 = pneg %p52
      %p59 = scmp.eq.s32.totalorder %s17, 1
      %p60 = por %p58, %p59
      %p61 = scmp.ne.s32.totalorder %s53, %s56
      %p62 = scmp.eq.s32.totalorder %s17, 0
      %p63 = por %p61, %p62
      %p64 = scmp.ne.s32.totalorder %s53, %s56
      %p65 = scmp.eq.s32.totalorder %s22, 1
      %p66 = por %p64, %p65
      %p67 = scmp.ne.s32.totalorder %s56, %s57
      %p68 = scmp.eq.s32.totalorder %s22, 0
      %p69 = por %p67, %p68
      %p70 = scmp.ne.s32.totalorder %s56, %s57
      %p71 = scmp.eq.s32.totalorder %s23, 1
      %p72 = por %p70, %p71
      %p74 = scmp.ne.s32.totalorder %s57, %s73
      %p75 = scmp.eq.s32.totalorder %s23, 0
      %p76 = por %p74, %p75
      %s77 = ssub.s32 %s17, %s24
      %p78 = scmp.eq.s32.totalorder %s77, 0
      %s80 = sadd.s32 %s79, 1
      %s81 = scalar_select %p78, %s79, %s80
      %p84 = pneg %p78
      %p85 = scmp.eq.s32.totalorder %s17, 1
      %p86 = por %p84, %p85
      %p87 = scmp.ne.s32.totalorder %s79, %s82
      %p88 = scmp.eq.s32.totalorder %s17, 0
      %p89 = por %p87, %p88
      %p90 = scmp.ne.s32.totalorder %s79, %s82
      %p91 = scmp.eq.s32.totalorder %s22, 1
      %p92 = por %p90, %p91
      %p93 = scmp.ne.s32.totalorder %s82, %s83
      %p94 = scmp.eq.s32.totalorder %s22, 0
      %p95 = por %p93, %p94
      %p96 = scmp.ne.s32.totalorder %s82, %s83
      %p97 = scmp.eq.s32.totalorder %s23, 1
      %p98 = por %p96, %p97
      %p100 = scmp.ne.s32.totalorder %s83, %s99
      %p101 = scmp.eq.s32.totalorder %s23, 0
      %p102 = por %p100, %p101
      %s103 = ssub.s32 %s17, %s24
      %p104 = scmp.eq.s32.totalorder %s103, 0
      %s106 = sadd.s32 %s105, 1
      %s107 = scalar_select %p104, %s105, %s106
      %p110 = pneg %p104
      %p111 = scmp.eq.s32.totalorder %s17, 1
      %p112 = por %p110, %p111
      %p113 = scmp.ne.s32.totalorder %s105, %s108
      %p114 = scmp.eq.s32.totalorder %s17, 0
      %p115 = por %p113, %p114
      %p116 = scmp.ne.s32.totalorder %s105, %s108
      %p117 = scmp.eq.s32.totalorder %s22, 1
      %p118 = por %p116, %p117
      %p119 = scmp.ne.s32.totalorder %s108, %s109
      %p120 = scmp.eq.s32.totalorder %s22, 0
      %p121 = por %p119, %p120
      %p122 = scmp.ne.s32.totalorder %s108, %s109
      %p123 = scmp.eq.s32.totalorder %s23, 1
      %p124 = por %p122, %p123
      %p126 = scmp.ne.s32.totalorder %s109, %s125
      %p127 = scmp.eq.s32.totalorder %s23, 0
      %p128 = por %p126, %p127
      %s129 = ssub.s32 %s17, %s24
      %p130 = scmp.eq.s32.totalorder %s129, 0
      %s132 = sadd.s32 %s131, 1
      %s133 = scalar_select %p130, %s131, %s132
      %p136 = pneg %p130
      %p137 = scmp.eq.s32.totalorder %s17, 1
      %p138 = por %p136, %p137
      %p139 = scmp.ne.s32.totalorder %s131, %s134
      %p140 = scmp.eq.s32.totalorder %s17, 0
      %p141 = por %p139, %p140
      %p142 = scmp.ne.s32.totalorder %s131, %s134
      %p143 = scmp.eq.s32.totalorder %s22, 1
      %p144 = por %p142, %p143
      %p145 = scmp.ne.s32.totalorder %s134, %s135
      %p146 = scmp.eq.s32.totalorder %s22, 0
      %p147 = por %p145, %p146
      %p148 = scmp.ne.s32.totalorder %s134, %s135
      %p149 = scmp.eq.s32.totalorder %s23, 1
      %p150 = por %p148, %p149
      %p152 = scmp.ne.s32.totalorder %s135, %s151
      %p153 = scmp.eq.s32.totalorder %s23, 0
      %p154 = por %p152, %p153
      %p155 = scmp.le.s32.totalorder 1, %s17
      %p156 = scmp.lt.s32.totalorder %s17, 3
      %p157 = pnand %p155, %p156
      %p158 = pneg %p157
      // Predicated region
      $region9: #{tpu_custom_call.1} parent=5 // pred_check
        _
      $region10: #{tpu_custom_call.1} parent=5 // pred_check_branch
        %160 = sbr.rel (%p157) target = $region12
      $region11: #{tpu_custom_call.1} parent=5 // pred_region
        %s161 = ssub.s32 %s17, 1
      $region12: #{tpu_custom_call.1} parent=5 // pred_fallthru
        _
      %p162 = scmp.lt.s32.totalorder %s17, 2
      // Predicated region
      $region13: #{tpu_custom_call.1} parent=5 // pred_check
        %p163 = pneg %p162
      $region14: #{tpu_custom_call.1} parent=5 // pred_check_branch
        %165 = sbr.rel (%p163) target = $region16
      $region15: #{tpu_custom_call.1} parent=5 // pred_region
        // Predicated region
        $region17: #{tpu_custom_call.1} parent=15 // pred_check
          %p166 = pneg %p37
        $region18: #{tpu_custom_call.1} parent=15 // pred_check_branch
          %168 = sbr.rel (%p166) target = $region20
        $region19: #{tpu_custom_call.1} parent=15 // pred_region
          %s169 = sand.u32 %s27, 1
          %s170 = sand.u32 %s27, 1
          %s171 = smul.addr %s170, 240
          %s172 = scalar_lea.vmem [#allocation2], %s171
          %s173 = smul.u32 5, %s17
          %s174 = smul.addr %s173, 8
          %s175 = scalar_lea.vmem %s0, %s174
          // Predicated region
          $region21: #{tpu_custom_call.1} parent=19 // pred_check
            _
          $region22: #{tpu_custom_call.1} parent=19 // pred_check_branch
            %177 = sbr.rel (0) target = $region24
          $region23: #{tpu_custom_call.1} parent=19 // pred_region
            // Predicated region
            $region25: #{tpu_custom_call.1} parent=23 // pred_check
              _
            $region26: #{tpu_custom_call.1} parent=23 // pred_check_branch
              %179 = sbr.rel (0) target = $region28
            $region27: #{tpu_custom_call.1} parent=23 // pred_region
              loop: start=0, step=1, limit=1
              $region29: #{tpu_custom_call.1} parent=27 // loop_pre_header
                _
              $region30: #{tpu_custom_call.1} parent=27 // loop_header
                %s181 = sphi 0, %s185
                %p182 = scmp.ge.s32.totalorder %s181, 1
                %s186 = sphi %s175, %s175
                %s187 = sphi %s172, %s172
              $region31: #{tpu_custom_call.1} parent=27 // loop_header_branch
                %184 = sbr.rel (%p182) target = $region35
              $region32: #{tpu_custom_call.1} parent=27 // loop_body
                %v188 = vld [vmem:[%s186] sm:$0xff]
                %189 = vst [vmem:[%s187] sm:$0xff] %v188
                %v190 = vld [vmem:[%s186 + $0x8] sm:$0xff]
                %191 = vst [vmem:[%s187 + $0x8] sm:$0xff] %v190
                %v192 = vld [vmem:[%s186 + $0x10] sm:$0xff]
                %193 = vst [vmem:[%s187 + $0x10] sm:$0xff] %v192
                %v194 = vld [vmem:[%s186 + $0x18] sm:$0xff]
                %195 = vst [vmem:[%s187 + $0x18] sm:$0xff] %v194
                %v196 = vld [vmem:[%s186 + $0x20] sm:$0xff]
                %197 = vst [vmem:[%s187 + $0x20] sm:$0xff] %v196
                %v198 = vld [vmem:[%s186 + $0x50] sm:$0xff]
                %199 = vst [vmem:[%s187 + $0x28] sm:$0xff] %v198
                %v200 = vld [vmem:[%s186 + $0x58] sm:$0xff]
                %201 = vst [vmem:[%s187 + $0x30] sm:$0xff] %v200
                %v202 = vld [vmem:[%s186 + $0x60] sm:$0xff]
                %203 = vst [vmem:[%s187 + $0x38] sm:$0xff] %v202
                %v204 = vld [vmem:[%s186 + $0x68] sm:$0xff]
                %205 = vst [vmem:[%s187 + $0x40] sm:$0xff] %v204
                %v206 = vld [vmem:[%s186 + $0x70] sm:$0xff]
                %207 = vst [vmem:[%s187 + $0x48] sm:$0xff] %v206
                %v208 = vld [vmem:[%s186 + $0xa0] sm:$0xff]
                %209 = vst [vmem:[%s187 + $0x50] sm:$0xff] %v208
                %v210 = vld [vmem:[%s186 + $0xa8] sm:$0xff]
                %211 = vst [vmem:[%s187 + $0x58] sm:$0xff] %v210
                %v212 = vld [vmem:[%s186 + $0xb0] sm:$0xff]
                %213 = vst [vmem:[%s187 + $0x60] sm:$0xff] %v212
                %v214 = vld [vmem:[%s186 + $0xb8] sm:$0xff]
                %215 = vst [vmem:[%s187 + $0x68] sm:$0xff] %v214
                %v216 = vld [vmem:[%s186 + $0xc0] sm:$0xff]
                %217 = vst [vmem:[%s187 + $0x70] sm:$0xff] %v216
                %v218 = vld [vmem:[%s186 + $0xf0] sm:$0xff]
                %219 = vst [vmem:[%s187 + $0x78] sm:$0xff] %v218
                %v220 = vld [vmem:[%s186 + $0xf8] sm:$0xff]
                %221 = vst [vmem:[%s187 + $0x80] sm:$0xff] %v220
                %v222 = vld [vmem:[%s186 + $0x100] sm:$0xff]
                %223 = vst [vmem:[%s187 + $0x88] sm:$0xff] %v222
                %v224 = vld [vmem:[%s186 + $0x108] sm:$0xff]
                %225 = vst [vmem:[%s187 + $0x90] sm:$0xff] %v224
                %v226 = vld [vmem:[%s186 + $0x110] sm:$0xff]
                %227 = vst [vmem:[%s187 + $0x98] sm:$0xff] %v226
                %v228 = vld [vmem:[%s186 + $0x140] sm:$0xff]
                %229 = vst [vmem:[%s187 + $0xa0] sm:$0xff] %v228
                %v230 = vld [vmem:[%s186 + $0x148] sm:$0xff]
                %231 = vst [vmem:[%s187 + $0xa8] sm:$0xff] %v230
                %v232 = vld [vmem:[%s186 + $0x150] sm:$0xff]
                %233 = vst [vmem:[%s187 + $0xb0] sm:$0xff] %v232
                %v234 = vld [vmem:[%s186 + $0x158] sm:$0xff]
                %235 = vst [vmem:[%s187 + $0xb8] sm:$0xff] %v234
                %v236 = vld [vmem:[%s186 + $0x160] sm:$0xff]
                %237 = vst [vmem:[%s187 + $0xc0] sm:$0xff] %v236
                %v238 = vld [vmem:[%s186 + $0x190] sm:$0xff]
                %239 = vst [vmem:[%s187 + $0xc8] sm:$0xff] %v238
                %v240 = vld [vmem:[%s186 + $0x198] sm:$0xff]
                %241 = vst [vmem:[%s187 + $0xd0] sm:$0xff] %v240
                %v242 = vld [vmem:[%s186 + $0x1a0] sm:$0xff]
                %243 = vst [vmem:[%s187 + $0xd8] sm:$0xff] %v242
                %v244 = vld [vmem:[%s186 + $0x1a8] sm:$0xff]
                %245 = vst [vmem:[%s187 + $0xe0] sm:$0xff] %v244
                %v246 = vld [vmem:[%s186 + $0x1b0] sm:$0xff]
                %247 = vst [vmem:[%s187 + $0xe8] sm:$0xff] %v246
              $region33: #{tpu_custom_call.1} parent=27 // loop_footer
                %s185 = sadd.s32 1, %s181
              $region34: #{tpu_custom_call.1} parent=27 // loop_footer_branch
                %180 = sbr.rel target = $region30
              $region35: #{tpu_custom_call.1} parent=27 // loop_exit
                _
            $region28: #{tpu_custom_call.1} parent=23 // pred_fallthru
              _
            // Predicated region
            $region36: #{tpu_custom_call.1} parent=23 // pred_check
              _
            $region37: #{tpu_custom_call.1} parent=23 // pred_check_branch
              %249 = sbr.rel target = $region39
            $region38: #{tpu_custom_call.1} parent=23 // pred_region
              _
            $region39: #{tpu_custom_call.1} parent=23 // pred_fallthru
              _
          $region24: #{tpu_custom_call.1} parent=19 // pred_fallthru
            _
          %250 = vnop
        $region20: #{tpu_custom_call.1} parent=15 // pred_fallthru
          _
      $region16: #{tpu_custom_call.1} parent=5 // pred_fallthru
        _
      %p251 = scmp.le.s32.totalorder 1, %s17
      %p252 = scmp.lt.s32.totalorder %s17, 3
      %p253 = pnand %p251, %p252
      %p254 = pneg %p253
      // Predicated region
      $region40: #{tpu_custom_call.1} parent=5 // pred_check
        _
      $region41: #{tpu_custom_call.1} parent=5 // pred_check_branch
        %256 = sbr.rel (%p253) target = $region43
      $region42: #{tpu_custom_call.1} parent=5 // pred_region
        %s257 = ssub.s32 %s17, 1
        %s258 = sand.u32 %s30, 1
        %s259 = sand.u32 %s30, 1
        %s260 = smul.addr %s259, 240
        %s261 = scalar_lea.vmem [#allocation2], %s260
        // Predicated region
        $region44: #{tpu_custom_call.1} parent=42 // pred_check
          %p262 = pneg %p43
        $region45: #{tpu_custom_call.1} parent=42 // pred_check_branch
          %264 = sbr.rel (%p262) target = $region47
        $region46: #{tpu_custom_call.1} parent=42 // pred_region
          _
        $region47: #{tpu_custom_call.1} parent=42 // pred_fallthru
          _
        %s265 = sand.u32 %s30, 1
        %s266 = sand.u32 %s30, 1
        %s267 = smul.addr %s266, 240
        %s268 = scalar_lea.vmem [#allocation2], %s267
        %p269 = pneg %p43
        %p270 = pneg %p40
        %p271 = pneg %p69
        %p272 = pneg %p66
        %s273 = sand.u32 %s56, 1
        %s274 = scalar_lea.sflag [#allocation4], %s273
        %s275 = sand.u32 %s56, 1
        %s276 = smul.addr %s275, 10
        %s277 = scalar_lea.vmem [#allocation3], %s276
        %p278 = pneg %p95
        %p279 = pneg %p92
        %s280 = sand.u32 %s82, 1
        %s281 = scalar_lea.sflag [#allocation6], %s280
        %s282 = sand.u32 %s82, 1
        %s283 = smul.addr %s282, 10
        %s284 = scalar_lea.vmem [#allocation5], %s283
        %p285 = pneg %p121
        %p286 = pneg %p118
        %s287 = sand.u32 %s108, 1
        %s288 = sand.u32 %s108, 1
        %s289 = smul.addr %s288, 10
        %s290 = scalar_lea.vmem [#allocation7], %s289
        %p291 = pneg %p147
        %p292 = pneg %p144
        %s293 = sand.u32 %s134, 1
        %s294 = sand.u32 %s134, 1
        %s295 = smul.addr %s294, 10
        %s296 = scalar_lea.vmem [#allocation8], %s295
        %s297 = smul.u32 5, %s22
        %s298 = smul.u32 5, %s22
        %s299 = smul.u32 5, %s22
        %s300 = smul.u32 5, %s22
        %s301 = smul.u32 5, %s22
        %v304 = vld [vmem:[%s261] sm:$0xff]
        %v305 = vld [vmem:[%s261 + $0x8] sm:$0xff]
        %v306 = vld [vmem:[%s261 + $0x10] sm:$0xff]
        %v307 = vld [vmem:[%s261 + $0x18] sm:$0xff]
        %v308 = vld [vmem:[%s261 + $0x20] sm:$0xff]
        %v309 = vld [vmem:[%s261 + $0x28] sm:$0xff]
        %v310 = vld [vmem:[%s261 + $0x30] sm:$0xff]
        %v311 = vld [vmem:[%s261 + $0x38] sm:$0xff]
        %v312 = vld [vmem:[%s261 + $0x40] sm:$0xff]
        %v313 = vld [vmem:[%s261 + $0x48] sm:$0xff]
        %v314 = vld [vmem:[%s261 + $0x50] sm:$0x1]
        %v315 = vld [vmem:[%s261 + $0x58] sm:$0x1]
        %v316 = vld [vmem:[%s261 + $0x60] sm:$0x1]
        %v317 = vld [vmem:[%s261 + $0x68] sm:$0x1]
        %v318 = vld [vmem:[%s261 + $0x70] sm:$0x1]
        %v319 = vld [vmem:[%s261 + $0x78] sm:$0xff]
        %v320 = vld [vmem:[%s261 + $0x80] sm:$0xff]
        %v321 = vld [vmem:[%s261 + $0x88] sm:$0xff]
        %v322 = vld [vmem:[%s261 + $0x90] sm:$0xff]
        %v323 = vld [vmem:[%s261 + $0x98] sm:$0xff]
        %v324 = vld [vmem:[%s261 + $0xa0] sm:$0xff]
        %v325 = vld [vmem:[%s261 + $0xa8] sm:$0xff]
        %v326 = vld [vmem:[%s261 + $0xb0] sm:$0xff]
        %v327 = vld [vmem:[%s261 + $0xb8] sm:$0xff]
        %v328 = vld [vmem:[%s261 + $0xc0] sm:$0xff]
        %v329 = vld [vmem:[%s261 + $0xc8] sm:$0x1]
        %v330 = vld [vmem:[%s261 + $0xd0] sm:$0x1]
        %v331 = vld [vmem:[%s261 + $0xd8] sm:$0x1]
        %v332 = vld [vmem:[%s261 + $0xe0] sm:$0x1]
        %v333 = vld [vmem:[%s261 + $0xe8] sm:$0x1]
        %vm334 = vcmask 1047553
        %v335 = vsel %vm334, %v304, -inf
        %v336 = vmax.f32 %v335, %v309
        %vm337 = vcmask 1040384
        %v338 = vsel %vm337, %v314, -inf
        %v339 = vmax.f32 %v336, %v338
        %v340 = vrot.slane %v339, 4
        %v341 = vmax.f32 %v339, %v340
        %v342 = vrot.slane %v341, 2
        %v343 = vmax.f32 %v341, %v342
        %v344 = vrot.slane %v343, 1
        %v345 = vmax.f32 %v343, %v344
        %v346 = vsel %vm334, %v305, -inf
        %v347 = vmax.f32 %v346, %v310
        %v348 = vsel %vm337, %v315, -inf
        %v349 = vmax.f32 %v347, %v348
        %v350 = vrot.slane %v349, 4
        %v351 = vmax.f32 %v349, %v350
        %v352 = vrot.slane %v351, 2
        %v353 = vmax.f32 %v351, %v352
        %v354 = vrot.slane %v353, 1
        %v355 = vmax.f32 %v353, %v354
        %v356 = vsel %vm334, %v306, -inf
        %v357 = vmax.f32 %v356, %v311
        %v358 = vsel %vm337, %v316, -inf
        %v359 = vmax.f32 %v357, %v358
        %v360 = vrot.slane %v359, 4
        %v361 = vmax.f32 %v359, %v360
        %v362 = vrot.slane %v361, 2
        %v363 = vmax.f32 %v361, %v362
        %v364 = vrot.slane %v363, 1
        %v365 = vmax.f32 %v363, %v364
        %v366 = vsel %vm334, %v307, -inf
        %v367 = vmax.f32 %v366, %v312
        %v368 = vsel %vm337, %v317, -inf
        %v369 = vmax.f32 %v367, %v368
        %v370 = vrot.slane %v369, 4
        %v371 = vmax.f32 %v369, %v370
        %v372 = vrot.slane %v371, 2
        %v373 = vmax.f32 %v371, %v372
        %v374 = vrot.slane %v373, 1
        %v375 = vmax.f32 %v373, %v374
        %v376 = vsel %vm334, %v308, -inf
        %v377 = vmax.f32 %v376, %v313
        %v378 = vsel %vm337, %v318, -inf
        %v379 = vmax.f32 %v377, %v378
        %v380 = vrot.slane %v379, 4
        %v381 = vmax.f32 %v379, %v380
        %v382 = vrot.slane %v381, 2
        %v383 = vmax.f32 %v381, %v382
        %v384 = vrot.slane %v383, 1
        %v385 = vmax.f32 %v383, %v384
        %v386 = vsel %vm334, %v319, -inf
        %v387 = vmax.f32 %v386, %v324
        %v388 = vsel %vm337, %v329, -inf
        %v389 = vmax.f32 %v387, %v388
        %v390 = vrot.slane %v389, 4
        %v391 = vmax.f32 %v389, %v390
        %v392 = vrot.slane %v391, 2
        %v393 = vmax.f32 %v391, %v392
        %v394 = vrot.slane %v393, 1
        %v395 = vmax.f32 %v393, %v394
        %v396 = vsel %vm334, %v320, -inf
        %v397 = vmax.f32 %v396, %v325
        %v398 = vsel %vm337, %v330, -inf
        %v399 = vmax.f32 %v397, %v398
        %v400 = vrot.slane %v399, 4
        %v401 = vmax.f32 %v399, %v400
        %v402 = vrot.slane %v401, 2
        %v403 = vmax.f32 %v401, %v402
        %v404 = vrot.slane %v403, 1
        %v405 = vmax.f32 %v403, %v404
        %v406 = vsel %vm334, %v321, -inf
        %v407 = vmax.f32 %v406, %v326
        %v408 = vsel %vm337, %v331, -inf
        %v409 = vmax.f32 %v407, %v408
        %v410 = vrot.slane %v409, 4
        %v411 = vmax.f32 %v409, %v410
        %v412 = vrot.slane %v411, 2
        %v413 = vmax.f32 %v411, %v412
        %v414 = vrot.slane %v413, 1
        %v415 = vmax.f32 %v413, %v414
        %v416 = vsel %vm334, %v322, -inf
        %v417 = vmax.f32 %v416, %v327
        %v418 = vsel %vm337, %v332, -inf
        %v419 = vmax.f32 %v417, %v418
        %v420 = vrot.slane %v419, 4
        %v421 = vmax.f32 %v419, %v420
        %v422 = vrot.slane %v421, 2
        %v423 = vmax.f32 %v421, %v422
        %v424 = vrot.slane %v423, 1
        %v425 = vmax.f32 %v423, %v424
        %v426 = vsel %vm334, %v323, -inf
        %v427 = vmax.f32 %v426, %v328
        %v428 = vsel %vm337, %v333, -inf
        %v429 = vmax.f32 %v427, %v428
        %v430 = vrot.slane %v429, 4
        %v431 = vmax.f32 %v429, %v430
        %v432 = vrot.slane %v431, 2
        %v433 = vmax.f32 %v431, %v432
        %v434 = vrot.slane %v433, 1
        %v435 = vmax.f32 %v433, %v434
        %v436 = vlaneseq
        %v437 = vshrl.u32 %v436, 7
        %v438 = vadd.s32 %v437, 8
        %vm439 = vcmp.eq.f32.partialorder %v304, %v345
        %vm440 = vcmp.eq.f32.partialorder %v305, %v355
        %vm441 = vcmp.eq.f32.partialorder %v306, %v365
        %vm442 = vcmp.eq.f32.partialorder %v307, %v375
        %vm443 = vcmp.eq.f32.partialorder %v308, %v385
        %vm444 = vcmp.eq.f32.partialorder %v309, %v345
        %vm445 = vcmp.eq.f32.partialorder %v310, %v355
        %vm446 = vcmp.eq.f32.partialorder %v311, %v365
        %vm447 = vcmp.eq.f32.partialorder %v312, %v375
        %vm448 = vcmp.eq.f32.partialorder %v313, %v385
        %vm449 = vcmp.eq.f32.partialorder %v314, %v345
        %vm450 = vcmp.eq.f32.partialorder %v315, %v355
        %vm451 = vcmp.eq.f32.partialorder %v316, %v365
        %vm452 = vcmp.eq.f32.partialorder %v317, %v375
        %vm453 = vcmp.eq.f32.partialorder %v318, %v385
        %vm454 = vcmp.eq.f32.partialorder %v319, %v395
        %vm455 = vcmp.eq.f32.partialorder %v320, %v405
        %vm456 = vcmp.eq.f32.partialorder %v321, %v415
        %vm457 = vcmp.eq.f32.partialorder %v322, %v425
        %vm458 = vcmp.eq.f32.partialorder %v323, %v435
        %vm459 = vcmp.eq.f32.partialorder %v324, %v395
        %vm460 = vcmp.eq.f32.partialorder %v325, %v405
        %vm461 = vcmp.eq.f32.partialorder %v326, %v415
        %vm462 = vcmp.eq.f32.partialorder %v327, %v425
        %vm463 = vcmp.eq.f32.partialorder %v328, %v435
        %vm464 = vcmp.eq.f32.partialorder %v329, %v395
        %vm465 = vcmp.eq.f32.partialorder %v330, %v405
        %vm466 = vcmp.eq.f32.partialorder %v331, %v415
        %vm467 = vcmp.eq.f32.partialorder %v332, %v425
        %vm468 = vcmp.eq.f32.partialorder %v333, %v435
        %v469 = vrot.slane %v437, 7
        %v470 = vrot.slane %v438, 7
        %v471 = vsel %vm337, %v469, %v470
        %v472 = vsel %vm439, %v469, 16
        %v473 = vsel %vm440, %v469, 16
        %v474 = vsel %vm441, %v469, 16
        %v475 = vsel %vm442, %v469, 16
        %v476 = vsel %vm443, %v469, 16
        %v477 = vsel %vm444, %v471, 16
        %v478 = vsel %vm445, %v471, 16
        %v479 = vsel %vm446, %v471, 16
        %v480 = vsel %vm447, %v471, 16
        %v481 = vsel %vm448, %v471, 16
        %v482 = vsel %vm449, %v470, 16
        %v483 = vsel %vm450, %v470, 16
        %v484 = vsel %vm451, %v470, 16
        %v485 = vsel %vm452, %v470, 16
        %v486 = vsel %vm453, %v470, 16
        %v487 = vsel %vm454, %v469, 16
        %v488 = vsel %vm455, %v469, 16
        %v489 = vsel %vm456, %v469, 16
        %v490 = vsel %vm457, %v469, 16
        %v491 = vsel %vm458, %v469, 16
        %v492 = vsel %vm459, %v471, 16
        %v493 = vsel %vm460, %v471, 16
        %v494 = vsel %vm461, %v471, 16
        %v495 = vsel %vm462, %v471, 16
        %v496 = vsel %vm463, %v471, 16
        %v497 = vsel %vm464, %v470, 16
        %v498 = vsel %vm465, %v470, 16
        %v499 = vsel %vm466, %v470, 16
        %v500 = vsel %vm467, %v470, 16
        %v501 = vsel %vm468, %v470, 16
        %v502 = vsel %vm334, %v472, 2147483647
        %vm503 = vcmp.lt.s32.totalorder %v502, %v477
        %v504 = vsel %vm503, %v502, %v477
        %v505 = vsel %vm337, %v482, 2147483647
        %vm506 = vcmp.lt.s32.totalorder %v504, %v505
        %v507 = vsel %vm506, %v504, %v505
        %v508 = vrot.slane %v507, 4
        %vm509 = vcmp.lt.s32.totalorder %v507, %v508
        %v510 = vsel %vm509, %v507, %v508
        %v511 = vrot.slane %v510, 2
        %vm512 = vcmp.lt.s32.totalorder %v510, %v511
        %v513 = vsel %vm512, %v510, %v511
        %v514 = vrot.slane %v513, 1
        %vm515 = vcmp.lt.s32.totalorder %v513, %v514
        %v516 = vsel %vm515, %v513, %v514
        %v517 = vsel %vm334, %v473, 2147483647
        %vm518 = vcmp.lt.s32.totalorder %v517, %v478
        %v519 = vsel %vm518, %v517, %v478
        %v520 = vsel %vm337, %v483, 2147483647
        %vm521 = vcmp.lt.s32.totalorder %v519, %v520
        %v522 = vsel %vm521, %v519, %v520
        %v523 = vrot.slane %v522, 4
        %vm524 = vcmp.lt.s32.totalorder %v522, %v523
        %v525 = vsel %vm524, %v522, %v523
        %v526 = vrot.slane %v525, 2
        %vm527 = vcmp.lt.s32.totalorder %v525, %v526
        %v528 = vsel %vm527, %v525, %v526
        %v529 = vrot.slane %v528, 1
        %vm530 = vcmp.lt.s32.totalorder %v528, %v529
        %v531 = vsel %vm530, %v528, %v529
        %v532 = vsel %vm334, %v474, 2147483647
        %vm533 = vcmp.lt.s32.totalorder %v532, %v479
        %v534 = vsel %vm533, %v532, %v479
        %v535 = vsel %vm337, %v484, 2147483647
        %vm536 = vcmp.lt.s32.totalorder %v534, %v535
        %v537 = vsel %vm536, %v534, %v535
        %v538 = vrot.slane %v537, 4
        %vm539 = vcmp.lt.s32.totalorder %v537, %v538
        %v540 = vsel %vm539, %v537, %v538
        %v541 = vrot.slane %v540, 2
        %vm542 = vcmp.lt.s32.totalorder %v540, %v541
        %v543 = vsel %vm542, %v540, %v541
        %v544 = vrot.slane %v543, 1
        %vm545 = vcmp.lt.s32.totalorder %v543, %v544
        %v546 = vsel %vm545, %v543, %v544
        %v547 = vsel %vm334, %v475, 2147483647
        %vm548 = vcmp.lt.s32.totalorder %v547, %v480
        %v549 = vsel %vm548, %v547, %v480
        %v550 = vsel %vm337, %v485, 2147483647
        %vm551 = vcmp.lt.s32.totalorder %v549, %v550
        %v552 = vsel %vm551, %v549, %v550
        %v553 = vrot.slane %v552, 4
        %vm554 = vcmp.lt.s32.totalorder %v552, %v553
        %v555 = vsel %vm554, %v552, %v553
        %v556 = vrot.slane %v555, 2
        %vm557 = vcmp.lt.s32.totalorder %v555, %v556
        %v558 = vsel %vm557, %v555, %v556
        %v559 = vrot.slane %v558, 1
        %vm560 = vcmp.lt.s32.totalorder %v558, %v559
        %v561 = vsel %vm560, %v558, %v559
        %v562 = vsel %vm334, %v476, 2147483647
        %vm563 = vcmp.lt.s32.totalorder %v562, %v481
        %v564 = vsel %vm563, %v562, %v481
        %v565 = vsel %vm337, %v486, 2147483647
        %vm566 = vcmp.lt.s32.totalorder %v564, %v565
        %v567 = vsel %vm566, %v564, %v565
        %v568 = vrot.slane %v567, 4
        %vm569 = vcmp.lt.s32.totalorder %v567, %v568
        %v570 = vsel %vm569, %v567, %v568
        %v571 = vrot.slane %v570, 2
        %vm572 = vcmp.lt.s32.totalorder %v570, %v571
        %v573 = vsel %vm572, %v570, %v571
        %v574 = vrot.slane %v573, 1
        %vm575 = vcmp.lt.s32.totalorder %v573, %v574
        %v576 = vsel %vm575, %v573, %v574
        %v577 = vsel %vm334, %v487, 2147483647
        %vm578 = vcmp.lt.s32.totalorder %v577, %v492
        %v579 = vsel %vm578, %v577, %v492
        %v580 = vsel %vm337, %v497, 2147483647
        %vm581 = vcmp.lt.s32.totalorder %v579, %v580
        %v582 = vsel %vm581, %v579, %v580
        %v583 = vrot.slane %v582, 4
        %vm584 = vcmp.lt.s32.totalorder %v582, %v583
        %v585 = vsel %vm584, %v582, %v583
        %v586 = vrot.slane %v585, 2
        %vm587 = vcmp.lt.s32.totalorder %v585, %v586
        %v588 = vsel %vm587, %v585, %v586
        %v589 = vrot.slane %v588, 1
        %vm590 = vcmp.lt.s32.totalorder %v588, %v589
        %v591 = vsel %vm590, %v588, %v589
        %v592 = vsel %vm334, %v488, 2147483647
        %vm593 = vcmp.lt.s32.totalorder %v592, %v493
        %v594 = vsel %vm593, %v592, %v493
        %v595 = vsel %vm337, %v498, 2147483647
        %vm596 = vcmp.lt.s32.totalorder %v594, %v595
        %v597 = vsel %vm596, %v594, %v595
        %v598 = vrot.slane %v597, 4
        %vm599 = vcmp.lt.s32.totalorder %v597, %v598
        %v600 = vsel %vm599, %v597, %v598
        %v601 = vrot.slane %v600, 2
        %vm602 = vcmp.lt.s32.totalorder %v600, %v601
        %v603 = vsel %vm602, %v600, %v601
        %v604 = vrot.slane %v603, 1
        %vm605 = vcmp.lt.s32.totalorder %v603, %v604
        %v606 = vsel %vm605, %v603, %v604
        %v607 = vsel %vm334, %v489, 2147483647
        %vm608 = vcmp.lt.s32.totalorder %v607, %v494
        %v609 = vsel %vm608, %v607, %v494
        %v610 = vsel %vm337, %v499, 2147483647
        %vm611 = vcmp.lt.s32.totalorder %v609, %v610
        %v612 = vsel %vm611, %v609, %v610
        %v613 = vrot.slane %v612, 4
        %vm614 = vcmp.lt.s32.totalorder %v612, %v613
        %v615 = vsel %vm614, %v612, %v613
        %v616 = vrot.slane %v615, 2
        %vm617 = vcmp.lt.s32.totalorder %v615, %v616
        %v618 = vsel %vm617, %v615, %v616
        %v619 = vrot.slane %v618, 1
        %vm620 = vcmp.lt.s32.totalorder %v618, %v619
        %v621 = vsel %vm620, %v618, %v619
        %v622 = vsel %vm334, %v490, 2147483647
        %vm623 = vcmp.lt.s32.totalorder %v622, %v495
        %v624 = vsel %vm623, %v622, %v495
        %v625 = vsel %vm337, %v500, 2147483647
        %vm626 = vcmp.lt.s32.totalorder %v624, %v625
        %v627 = vsel %vm626, %v624, %v625
        %v628 = vrot.slane %v627, 4
        %vm629 = vcmp.lt.s32.totalorder %v627, %v628
        %v630 = vsel %vm629, %v627, %v628
        %v631 = vrot.slane %v630, 2
        %vm632 = vcmp.lt.s32.totalorder %v630, %v631
        %v633 = vsel %vm632, %v630, %v631
        %v634 = vrot.slane %v633, 1
        %vm635 = vcmp.lt.s32.totalorder %v633, %v634
        %v636 = vsel %vm635, %v633, %v634
        %v637 = vsel %vm334, %v491, 2147483647
        %vm638 = vcmp.lt.s32.totalorder %v637, %v496
        %v639 = vsel %vm638, %v637, %v496
        %v640 = vsel %vm337, %v501, 2147483647
        %vm641 = vcmp.lt.s32.totalorder %v639, %v640
        %v642 = vsel %vm641, %v639, %v640
        %v643 = vrot.slane %v642, 4
        %vm644 = vcmp.lt.s32.totalorder %v642, %v643
        %v645 = vsel %vm644, %v642, %v643
        %v646 = vrot.slane %v645, 2
        %vm647 = vcmp.lt.s32.totalorder %v645, %v646
        %v648 = vsel %vm647, %v645, %v646
        %v649 = vrot.slane %v648, 1
        %vm650 = vcmp.lt.s32.totalorder %v648, %v649
        %v651 = vsel %vm650, %v648, %v649
        %v662 = vcombine.low %v304, %v305
        %v663 = vcombine.low %v306, %v307
        %v665 = vunpack.c.l.s4 1966171168
        %v666 = vunpack.c.0.s8 %v665
        %v667 = vlaneseq
        %v668 = vshrl.u32 %v667, 7
        %v669 = vsub.s32 %v666, %v668
        %v670 = vrot.slane %v662, %v669
        %v672 = vunpack.c.l.s4 1966171168
        %v673 = vunpack.c.0.s8 %v672
        %v674 = vlaneseq
        %v675 = vshrl.u32 %v674, 7
        %v676 = vsub.s32 %v673, %v675
        %v677 = vrot.slane %v663, %v676
        %v679 = vunpack.c.l.s4 1966171168
        %v680 = vunpack.c.0.s8 %v679
        %v681 = vlaneseq
        %v682 = vshrl.u32 %v681, 7
        %v683 = vsub.s32 %v680, %v682
        %v684 = vrot.slane %v308, %v683
        %v685 = vcombine.low %v670, %v677
        %v687 = vunpack.c.l.s4 1966171168
        %v688 = vunpack.c.0.s8 %v687
        %v689 = vlaneseq
        %v690 = vshrl.u32 %v689, 7
        %v691 = vsub.s32 %v688, %v690
        %v692 = vrot.slane %v685, %v691
        %v694 = vunpack.c.l.s4 1966171168
        %v695 = vunpack.c.0.s8 %v694
        %v696 = vlaneseq
        %v697 = vshrl.u32 %v696, 7
        %v698 = vsub.s32 %v695, %v697
        %v699 = vrot.slane %v684, %v698
        %v700 = vcombine.low %v692, %v699
        %v701 = vcombine.low %v319, %v320
        %v702 = vcombine.low %v321, %v322
        %v704 = vunpack.c.l.s4 1966171168
        %v705 = vunpack.c.0.s8 %v704
        %v706 = vlaneseq
        %v707 = vshrl.u32 %v706, 7
        %v708 = vsub.s32 %v705, %v707
        %v709 = vrot.slane %v701, %v708
        %v711 = vunpack.c.l.s4 1966171168
        %v712 = vunpack.c.0.s8 %v711
        %v713 = vlaneseq
        %v714 = vshrl.u32 %v713, 7
        %v715 = vsub.s32 %v712, %v714
        %v716 = vrot.slane %v702, %v715
        %v718 = vunpack.c.l.s4 1966171168
        %v719 = vunpack.c.0.s8 %v718
        %v720 = vlaneseq
        %v721 = vshrl.u32 %v720, 7
        %v722 = vsub.s32 %v719, %v721
        %v723 = vrot.slane %v323, %v722
        %v724 = vcombine.low %v709, %v716
        %v726 = vunpack.c.l.s4 1966171168
        %v727 = vunpack.c.0.s8 %v726
        %v728 = vlaneseq
        %v729 = vshrl.u32 %v728, 7
        %v730 = vsub.s32 %v727, %v729
        %v731 = vrot.slane %v724, %v730
        %v733 = vunpack.c.l.s4 1966171168
        %v734 = vunpack.c.0.s8 %v733
        %v735 = vlaneseq
        %v736 = vshrl.u32 %v735, 7
        %v737 = vsub.s32 %v734, %v736
        %v738 = vrot.slane %v723, %v737
        %v739 = vcombine.low %v731, %v738
        %v742 = vlaneseq
        %vm743 = vcmp.ge.s32.totalorder %v742, 0
        %vm744 = vcmp.lt.s32.totalorder %v742, 640
        %vm745 = vmand %vm743, %vm744
        %746 = vst.msk [vmem:[%s277] sm:$0x1f] %vm745, %v700
        %747 = vst.msk [vmem:[%s277 + $0x5] sm:$0x1f] %vm745, %v739
        %v758 = vcombine.low %v345, %v355
        %v759 = vcombine.low %v365, %v375
        %v761 = vunpack.c.l.s4 1966171168
        %v762 = vunpack.c.0.s8 %v761
        %v763 = vlaneseq
        %v764 = vshrl.u32 %v763, 7
        %v765 = vsub.s32 %v762, %v764
        %v766 = vrot.slane %v758, %v765
        %v768 = vunpack.c.l.s4 1966171168
        %v769 = vunpack.c.0.s8 %v768
        %v770 = vlaneseq
        %v771 = vshrl.u32 %v770, 7
        %v772 = vsub.s32 %v769, %v771
        %v773 = vrot.slane %v759, %v772
        %v775 = vunpack.c.l.s4 1966171168
        %v776 = vunpack.c.0.s8 %v775
        %v777 = vlaneseq
        %v778 = vshrl.u32 %v777, 7
        %v779 = vsub.s32 %v776, %v778
        %v780 = vrot.slane %v385, %v779
        %v781 = vcombine.low %v766, %v773
        %v783 = vunpack.c.l.s4 1966171168
        %v784 = vunpack.c.0.s8 %v783
        %v785 = vlaneseq
        %v786 = vshrl.u32 %v785, 7
        %v787 = vsub.s32 %v784, %v786
        %v788 = vrot.slane %v781, %v787
        %v790 = vunpack.c.l.s4 1966171168
        %v791 = vunpack.c.0.s8 %v790
        %v792 = vlaneseq
        %v793 = vshrl.u32 %v792, 7
        %v794 = vsub.s32 %v791, %v793
        %v795 = vrot.slane %v780, %v794
        %v796 = vcombine.low %v788, %v795
        %v797 = vcombine.low %v395, %v405
        %v798 = vcombine.low %v415, %v425
        %v800 = vunpack.c.l.s4 1966171168
        %v801 = vunpack.c.0.s8 %v800
        %v802 = vlaneseq
        %v803 = vshrl.u32 %v802, 7
        %v804 = vsub.s32 %v801, %v803
        %v805 = vrot.slane %v797, %v804
        %v807 = vunpack.c.l.s4 1966171168
        %v808 = vunpack.c.0.s8 %v807
        %v809 = vlaneseq
        %v810 = vshrl.u32 %v809, 7
        %v811 = vsub.s32 %v808, %v810
        %v812 = vrot.slane %v798, %v811
        %v814 = vunpack.c.l.s4 1966171168
        %v815 = vunpack.c.0.s8 %v814
        %v816 = vlaneseq
        %v817 = vshrl.u32 %v816, 7
        %v818 = vsub.s32 %v815, %v817
        %v819 = vrot.slane %v435, %v818
        %v820 = vcombine.low %v805, %v812
        %v822 = vunpack.c.l.s4 1966171168
        %v823 = vunpack.c.0.s8 %v822
        %v824 = vlaneseq
        %v825 = vshrl.u32 %v824, 7
        %v826 = vsub.s32 %v823, %v825
        %v827 = vrot.slane %v820, %v826
        %v829 = vunpack.c.l.s4 1966171168
        %v830 = vunpack.c.0.s8 %v829
        %v831 = vlaneseq
        %v832 = vshrl.u32 %v831, 7
        %v833 = vsub.s32 %v830, %v832
        %v834 = vrot.slane %v819, %v833
        %v835 = vcombine.low %v827, %v834
        %838 = vst.msk [vmem:[%s284] sm:$0x1f] %vm745, %v796
        %839 = vst.msk [vmem:[%s284 + $0x5] sm:$0x1f] %vm745, %v835
        %v840 = vpack.c.b16 %v516, %v516
        %v841 = vpack.c.b8 %v840, %v840
        %v842 = vpack.c.b16 %v531, %v531
        %v843 = vpack.c.b8 %v842, %v842
        %v844 = vpack.c.b16 %v546, %v546
        %v845 = vpack.c.b8 %v844, %v844
        %v846 = vpack.c.b16 %v561, %v561
        %v847 = vpack.c.b8 %v846, %v846
        %v848 = vpack.c.b16 %v576, %v576
        %v849 = vpack.c.b8 %v848, %v848
        %v850 = vpack.c.b16 %v591, %v591
        %v851 = vpack.c.b8 %v850, %v850
        %v852 = vpack.c.b16 %v606, %v606
        %v853 = vpack.c.b8 %v852, %v852
        %v854 = vpack.c.b16 %v621, %v621
        %v855 = vpack.c.b8 %v854, %v854
        %v856 = vpack.c.b16 %v636, %v636
        %v857 = vpack.c.b8 %v856, %v856
        %v858 = vpack.c.b16 %v651, %v651
        %v859 = vpack.c.b8 %v858, %v858
        %v860 = vcombine.low %v841, %v843
        %v861 = vcombine.low %v845, %v847
        %v863 = vunpack.c.l.s4 1966171168
        %v864 = vunpack.c.0.s8 %v863
        %v865 = vlaneseq
        %v866 = vshrl.u32 %v865, 7
        %v867 = vsub.s32 %v864, %v866
        %v868 = vrot.slane %v860, %v867
        %v870 = vunpack.c.l.s4 1966171168
        %v871 = vunpack.c.0.s8 %v870
        %v872 = vlaneseq
        %v873 = vshrl.u32 %v872, 7
        %v874 = vsub.s32 %v871, %v873
        %v875 = vrot.slane %v861, %v874
        %v877 = vunpack.c.l.s4 1966171168
        %v878 = vunpack.c.0.s8 %v877
        %v879 = vlaneseq
        %v880 = vshrl.u32 %v879, 7
        %v881 = vsub.s32 %v878, %v880
        %v882 = vrot.slane %v849, %v881
        %v883 = vcombine.low %v868, %v875
        %v885 = vunpack.c.l.s4 1966171168
        %v886 = vunpack.c.0.s8 %v885
        %v887 = vlaneseq
        %v888 = vshrl.u32 %v887, 7
        %v889 = vsub.s32 %v886, %v888
        %v890 = vrot.slane %v883, %v889
        %v892 = vunpack.c.l.s4 1966171168
        %v893 = vunpack.c.0.s8 %v892
        %v894 = vlaneseq
        %v895 = vshrl.u32 %v894, 7
        %v896 = vsub.s32 %v893, %v895
        %v897 = vrot.slane %v882, %v896
        %v898 = vcombine.low %v890, %v897
        %v899 = vcombine.low %v851, %v853
        %v900 = vcombine.low %v855, %v857
        %v902 = vunpack.c.l.s4 1966171168
        %v903 = vunpack.c.0.s8 %v902
        %v904 = vlaneseq
        %v905 = vshrl.u32 %v904, 7
        %v906 = vsub.s32 %v903, %v905
        %v907 = vrot.slane %v899, %v906
        %v909 = vunpack.c.l.s4 1966171168
        %v910 = vunpack.c.0.s8 %v909
        %v911 = vlaneseq
        %v912 = vshrl.u32 %v911, 7
        %v913 = vsub.s32 %v910, %v912
        %v914 = vrot.slane %v900, %v913
        %v916 = vunpack.c.l.s4 1966171168
        %v917 = vunpack.c.0.s8 %v916
        %v918 = vlaneseq
        %v919 = vshrl.u32 %v918, 7
        %v920 = vsub.s32 %v917, %v919
        %v921 = vrot.slane %v859, %v920
        %v922 = vcombine.low %v907, %v914
        %v924 = vunpack.c.l.s4 1966171168
        %v925 = vunpack.c.0.s8 %v924
        %v926 = vlaneseq
        %v927 = vshrl.u32 %v926, 7
        %v928 = vsub.s32 %v925, %v927
        %v929 = vrot.slane %v922, %v928
        %v931 = vunpack.c.l.s4 1966171168
        %v932 = vunpack.c.0.s8 %v931
        %v933 = vlaneseq
        %v934 = vshrl.u32 %v933, 7
        %v935 = vsub.s32 %v932, %v934
        %v936 = vrot.slane %v921, %v935
        %v937 = vcombine.low %v929, %v936
        %vm938 = vcmask 1040384
        %vm939 = vsmask.f32 0
        %vm940 = vmand %vm938, %vm939
        %vm941 = vcmask 1041409
        %vm942 = vsmask.f32 1024
        %vm943 = vmand %vm941, %vm942
        %vm944 = vmor %vm943, %vm940
        %vm945 = vcmask 1042434
        %vm946 = vsmask.f32 2048
        %vm947 = vmand %vm945, %vm946
        %vm948 = vmor %vm947, %vm944
        %vm949 = vcmask 1043459
        %vm950 = vsmask.f32 3072
        %vm951 = vmand %vm949, %vm950
        %vm952 = vmor %vm951, %vm948
        %vm953 = vcmask 1044484
        %vm954 = vsmask.f32 4096
        %vm955 = vmand %vm953, %vm954
        %vm956 = vmor %vm955, %vm952
        %v957 = vld [vmem:[%s290] sm:$0x1f]
        %v958 = vsel %vm956, %v898, %v957
        %959 = vst [vmem:[%s290] sm:$0x1f] %v958
        %v960 = vld [vmem:[%s290 + $0x5] sm:$0x1f]
        %v961 = vsel %vm956, %v937, %v960
        %962 = vst [vmem:[%s290 + $0x5] sm:$0x1f] %v961
        %vm963 = vcmp.gt.f32.partialorder %v304, 0.2
        %vm964 = vcmp.gt.f32.partialorder %v305, 0.2
        %vm965 = vcmp.gt.f32.partialorder %v306, 0.2
        %vm966 = vcmp.gt.f32.partialorder %v307, 0.2
        %vm967 = vcmp.gt.f32.partialorder %v308, 0.2
        %vm968 = vcmp.gt.f32.partialorder %v319, 0.2
        %vm969 = vcmp.gt.f32.partialorder %v320, 0.2
        %vm970 = vcmp.gt.f32.partialorder %v321, 0.2
        %vm971 = vcmp.gt.f32.partialorder %v322, 0.2
        %vm972 = vcmp.gt.f32.partialorder %v323, 0.2
        %vm973 = vcmp.eq.s32.totalorder %v516, 3
        %vm974 = vcmp.eq.s32.totalorder %v531, 3
        %vm975 = vcmp.eq.s32.totalorder %v546, 3
        %vm976 = vcmp.eq.s32.totalorder %v561, 3
        %vm977 = vcmp.eq.s32.totalorder %v576, 3
        %vm978 = vcmp.eq.s32.totalorder %v591, 3
        %vm979 = vcmp.eq.s32.totalorder %v606, 3
        %vm980 = vcmp.eq.s32.totalorder %v621, 3
        %vm981 = vcmp.eq.s32.totalorder %v636, 3
        %vm982 = vcmp.eq.s32.totalorder %v651, 3
        %vm983 = vmand %vm963, %vm973
        %vm984 = vmand %vm964, %vm974
        %vm985 = vmand %vm965, %vm975
        %vm986 = vmand %vm966, %vm976
        %vm987 = vmand %vm967, %vm977
        %vm988 = vmand %vm968, %vm978
        %vm989 = vmand %vm969, %vm979
        %vm990 = vmand %vm970, %vm980
        %vm991 = vmand %vm971, %vm981
        %vm992 = vmand %vm972, %vm982
        %vm993 = vmpackc.low %vm983, %vm983
        %vm994 = vmpackc.even %vm993, %vm993
        %vm995 = vmpackc.low %vm984, %vm984
        %vm996 = vmpackc.even %vm995, %vm995
        %vm997 = vmpackc.low %vm985, %vm985
        %vm998 = vmpackc.even %vm997, %vm997
        %vm999 = vmpackc.low %vm986, %vm986
        %vm1000 = vmpackc.even %vm999, %vm999
        %vm1001 = vmpackc.low %vm987, %vm987
        %vm1002 = vmpackc.even %vm1001, %vm1001
        %vm1003 = vmpackc.low %vm988, %vm988
        %vm1004 = vmpackc.even %vm1003, %vm1003
        %vm1005 = vmpackc.low %vm989, %vm989
        %vm1006 = vmpackc.even %vm1005, %vm1005
        %vm1007 = vmpackc.low %vm990, %vm990
        %vm1008 = vmpackc.even %vm1007, %vm1007
        %vm1009 = vmpackc.low %vm991, %vm991
        %vm1010 = vmpackc.even %vm1009, %vm1009
        %vm1011 = vmpackc.low %vm992, %vm992
        %vm1012 = vmpackc.even %vm1011, %vm1011
        %v1013 = vsel %vm994, 16843009, 0
        %v1014 = vsel %vm996, 16843009, 0
        %v1015 = vsel %vm998, 16843009, 0
        %v1016 = vsel %vm1000, 16843009, 0
        %v1017 = vsel %vm1002, 16843009, 0
        %v1018 = vsel %vm1004, 16843009, 0
        %v1019 = vsel %vm1006, 16843009, 0
        %v1020 = vsel %vm1008, 16843009, 0
        %v1021 = vsel %vm1010, 16843009, 0
        %v1022 = vsel %vm1012, 16843009, 0
        %v1023 = vcombine.low %v1013, %v1014
        %v1024 = vcombine.low %v1015, %v1016
        %v1026 = vunpack.c.l.s4 1966171168
        %v1027 = vunpack.c.0.s8 %v1026
        %v1028 = vlaneseq
        %v1029 = vshrl.u32 %v1028, 7
        %v1030 = vsub.s32 %v1027, %v1029
        %v1031 = vrot.slane %v1023, %v1030
        %v1033 = vunpack.c.l.s4 1966171168
        %v1034 = vunpack.c.0.s8 %v1033
        %v1035 = vlaneseq
        %v1036 = vshrl.u32 %v1035, 7
        %v1037 = vsub.s32 %v1034, %v1036
        %v1038 = vrot.slane %v1024, %v1037
        %v1040 = vunpack.c.l.s4 1966171168
        %v1041 = vunpack.c.0.s8 %v1040
        %v1042 = vlaneseq
        %v1043 = vshrl.u32 %v1042, 7
        %v1044 = vsub.s32 %v1041, %v1043
        %v1045 = vrot.slane %v1017, %v1044
        %v1046 = vcombine.low %v1031, %v1038
        %v1048 = vunpack.c.l.s4 1966171168
        %v1049 = vunpack.c.0.s8 %v1048
        %v1050 = vlaneseq
        %v1051 = vshrl.u32 %v1050, 7
        %v1052 = vsub.s32 %v1049, %v1051
        %v1053 = vrot.slane %v1046, %v1052
        %v1055 = vunpack.c.l.s4 1966171168
        %v1056 = vunpack.c.0.s8 %v1055
        %v1057 = vlaneseq
        %v1058 = vshrl.u32 %v1057, 7
        %v1059 = vsub.s32 %v1056, %v1058
        %v1060 = vrot.slane %v1045, %v1059
        %v1061 = vcombine.low %v1053, %v1060
        %v1062 = vcombine.low %v1018, %v1019
        %v1063 = vcombine.low %v1020, %v1021
        %v1065 = vunpack.c.l.s4 1966171168
        %v1066 = vunpack.c.0.s8 %v1065
        %v1067 = vlaneseq
        %v1068 = vshrl.u32 %v1067, 7
        %v1069 = vsub.s32 %v1066, %v1068
        %v1070 = vrot.slane %v1062, %v1069
        %v1072 = vunpack.c.l.s4 1966171168
        %v1073 = vunpack.c.0.s8 %v1072
        %v1074 = vlaneseq
        %v1075 = vshrl.u32 %v1074, 7
        %v1076 = vsub.s32 %v1073, %v1075
        %v1077 = vrot.slane %v1063, %v1076
        %v1079 = vunpack.c.l.s4 1966171168
        %v1080 = vunpack.c.0.s8 %v1079
        %v1081 = vlaneseq
        %v1082 = vshrl.u32 %v1081, 7
        %v1083 = vsub.s32 %v1080, %v1082
        %v1084 = vrot.slane %v1022, %v1083
        %v1085 = vcombine.low %v1070, %v1077
        %v1087 = vunpack.c.l.s4 1966171168
        %v1088 = vunpack.c.0.s8 %v1087
        %v1089 = vlaneseq
        %v1090 = vshrl.u32 %v1089, 7
        %v1091 = vsub.s32 %v1088, %v1090
        %v1092 = vrot.slane %v1085, %v1091
        %v1094 = vunpack.c.l.s4 1966171168
        %v1095 = vunpack.c.0.s8 %v1094
        %v1096 = vlaneseq
        %v1097 = vshrl.u32 %v1096, 7
        %v1098 = vsub.s32 %v1095, %v1097
        %v1099 = vrot.slane %v1084, %v1098
        %v1100 = vcombine.low %v1092, %v1099
        %v1101 = vld [vmem:[%s296] sm:$0x1f]
        %v1102 = vsel %vm956, %v1061, %v1101
        %1103 = vst [vmem:[%s296] sm:$0x1f] %v1102
        %v1104 = vld [vmem:[%s296 + $0x5] sm:$0x1f]
        %v1105 = vsel %vm956, %v1100, %v1104
        %1106 = vst [vmem:[%s296 + $0x5] sm:$0x1f] %v1105
        %s1107 = sand.u32 %s56, 1
        %s1108 = scalar_lea.sflag [#allocation4], %s1107
        %s1109 = sand.u32 %s56, 1
        %s1110 = smul.addr %s1109, 10
        %s1111 = scalar_lea.vmem [#allocation3], %s1110
        %s1112 = sand.u32 %s82, 1
        %s1113 = scalar_lea.sflag [#allocation6], %s1112
        %s1114 = sand.u32 %s82, 1
        %s1115 = smul.addr %s1114, 10
        %s1116 = scalar_lea.vmem [#allocation5], %s1115
        %s1117 = sand.u32 %s108, 1
        %s1118 = sand.u32 %s108, 1
        %s1119 = smul.addr %s1118, 10
        %s1120 = scalar_lea.vmem [#allocation7], %s1119
        %s1121 = sand.u32 %s134, 1
        %s1122 = sand.u32 %s134, 1
        %s1123 = smul.addr %s1122, 10
        %s1124 = scalar_lea.vmem [#allocation8], %s1123
        // Predicated region
        $region48: #{tpu_custom_call.1} parent=42 // pred_check
          %p1125 = pneg %p66
        $region49: #{tpu_custom_call.1} parent=42 // pred_check_branch
          %1127 = sbr.rel (%p1125) target = $region51
        $region50: #{tpu_custom_call.1} parent=42 // pred_region
          %s1128 = smul.u32 5, %s22
          %s1130 = ssub.s32 160, 160
          %1131 = vsyncadd %s1108, %s1130
          %s1132 = smul.addr %s1128, 16
          %s1133 = scalar_lea.hbm %s1, %s1132
          %s1134 = sshll.u32 %s1111, 4
          %s1135 = int_to_ptr.vmem [resolvable:$true] %s1134
          %1140 = dma.vmem_to_hbm [thread:$0]  %s1135, 160, %s1133, %s1108, 80, 160, 5
        $region51: #{tpu_custom_call.1} parent=42 // pred_fallthru
          _
        // Predicated region
        $region52: #{tpu_custom_call.1} parent=42 // pred_check
          %p1141 = pneg %p92
        $region53: #{tpu_custom_call.1} parent=42 // pred_check_branch
          %1143 = sbr.rel (%p1141) target = $region55
        $region54: #{tpu_custom_call.1} parent=42 // pred_region
          %s1144 = smul.u32 5, %s22
          %s1146 = ssub.s32 160, 160
          %1147 = vsyncadd %s1113, %s1146
          %s1148 = smul.addr %s1144, 16
          %s1149 = scalar_lea.hbm %s2, %s1148
          %s1150 = sshll.u32 %s1116, 4
          %s1151 = int_to_ptr.vmem [resolvable:$true] %s1150
          %1156 = dma.vmem_to_hbm [thread:$0]  %s1151, 160, %s1149, %s1113, 80, 160, 5
        $region55: #{tpu_custom_call.1} parent=42 // pred_fallthru
          _
        // Predicated region
        $region56: #{tpu_custom_call.1} parent=42 // pred_check
          %p1157 = pneg %p118
        $region57: #{tpu_custom_call.1} parent=42 // pred_check_branch
          %1159 = sbr.rel (%p1157) target = $region59
        $region58: #{tpu_custom_call.1} parent=42 // pred_region
          %s1160 = smul.u32 5, %s22
          %s1161 = scalar_lea.vmem %s3, %s1160
          // Predicated region
          $region60: #{tpu_custom_call.1} parent=58 // pred_check
            _
          $region61: #{tpu_custom_call.1} parent=58 // pred_check_branch
            %1163 = sbr.rel (0) target = $region63
          $region62: #{tpu_custom_call.1} parent=58 // pred_region
            // Predicated region
            $region64: #{tpu_custom_call.1} parent=62 // pred_check
              _
            $region65: #{tpu_custom_call.1} parent=62 // pred_check_branch
              %1165 = sbr.rel target = $region67
            $region66: #{tpu_custom_call.1} parent=62 // pred_region
              // Predicated region
              $region79: #{tpu_custom_call.1} parent=66 // pred_check
                _
              $region80: #{tpu_custom_call.1} parent=66 // pred_check_branch
                %1183 = sbr.rel (0) target = $region82
              $region81: #{tpu_custom_call.1} parent=66 // pred_region
                loop: start=0, step=1, limit=1
                $region83: #{tpu_custom_call.1} parent=81 // loop_pre_header
                  _
                $region84: #{tpu_custom_call.1} parent=81 // loop_header
                  %s1185 = sphi 0, %s1189
                  %p1186 = scmp.ge.s32.totalorder %s1185, 1
                  %s1190 = sphi %s1120, %s1120
                  %s1191 = sphi %s1161, %s1161
                $region85: #{tpu_custom_call.1} parent=81 // loop_header_branch
                  %1188 = sbr.rel (%p1186) target = $region89
                $region86: #{tpu_custom_call.1} parent=81 // loop_body
                  _
                $region87: #{tpu_custom_call.1} parent=81 // loop_footer
                  %s1189 = sadd.s32 1, %s1185
                $region88: #{tpu_custom_call.1} parent=81 // loop_footer_branch
                  %1184 = sbr.rel target = $region84
                $region89: #{tpu_custom_call.1} parent=81 // loop_exit
                  _
                %s1193 = ssub.s32 32, 1
                loop: start=0, step=1, limit=1
                $region90: #{tpu_custom_call.1} parent=81 // loop_pre_header
                  _
                $region91: #{tpu_custom_call.1} parent=81 // loop_header
                  %s1195 = sphi 0, %s1199
                  %p1196 = scmp.ge.s32.totalorder %s1195, 1
                  %s1200 = sphi %s1120, %s1120
                  %s1201 = sphi %s1161, %s1161
                $region92: #{tpu_custom_call.1} parent=81 // loop_header_branch
                  %1198 = sbr.rel (%p1196) target = $region96
                $region93: #{tpu_custom_call.1} parent=81 // loop_body
                  %v1202 = vld [vmem:[%s1200] sm:%s1193]
                  %1203 = vst [vmem:[%s1201] sm:%s1193] %v1202
                  %v1204 = vld [vmem:[%s1200 + $0x5] sm:%s1193]
                  %1205 = vst [vmem:[%s1201 + $0xa] sm:%s1193] %v1204
                $region94: #{tpu_custom_call.1} parent=81 // loop_footer
                  %s1199 = sadd.s32 1, %s1195
                $region95: #{tpu_custom_call.1} parent=81 // loop_footer_branch
                  %1194 = sbr.rel target = $region91
                $region96: #{tpu_custom_call.1} parent=81 // loop_exit
                  _
              $region82: #{tpu_custom_call.1} parent=66 // pred_fallthru
                _
            $region67: #{tpu_custom_call.1} parent=62 // pred_fallthru
              _
            // Predicated region
            $region68: #{tpu_custom_call.1} parent=62 // pred_check
              _
            $region69: #{tpu_custom_call.1} parent=62 // pred_check_branch
              %1167 = sbr.rel (0) target = $region71
            $region70: #{tpu_custom_call.1} parent=62 // pred_region
              %s1169 = ssub.s32 32, 1
              loop: start=0, step=1, limit=1
              $region72: #{tpu_custom_call.1} parent=70 // loop_pre_header
                _
              $region73: #{tpu_custom_call.1} parent=70 // loop_header
                %s1171 = sphi 0, %s1175
                %p1172 = scmp.ge.s32.totalorder %s1171, 1
                %s1176 = sphi %s1120, %s1120
                %s1177 = sphi %s1161, %s1161
              $region74: #{tpu_custom_call.1} parent=70 // loop_header_branch
                %1174 = sbr.rel (%p1172) target = $region78
              $region75: #{tpu_custom_call.1} parent=70 // loop_body
                %v1178 = vld [vmem:[%s1176] sm:%s1169]
                %1179 = vst [vmem:[%s1177] sm:%s1169] %v1178
                %v1180 = vld [vmem:[%s1176 + $0x5] sm:%s1169]
                %1181 = vst [vmem:[%s1177 + $0xa] sm:%s1169] %v1180
              $region76: #{tpu_custom_call.1} parent=70 // loop_footer
                %s1175 = sadd.s32 1, %s1171
              $region77: #{tpu_custom_call.1} parent=70 // loop_footer_branch
                %1170 = sbr.rel target = $region73
              $region78: #{tpu_custom_call.1} parent=70 // loop_exit
                _
            $region71: #{tpu_custom_call.1} parent=62 // pred_fallthru
              _
          $region63: #{tpu_custom_call.1} parent=58 // pred_fallthru
            _
          %1206 = vnop
        $region59: #{tpu_custom_call.1} parent=42 // pred_fallthru
          _
        // Predicated region
        $region97: #{tpu_custom_call.1} parent=42 // pred_check
          %p1207 = pneg %p144
        $region98: #{tpu_custom_call.1} parent=42 // pred_check_branch
          %1209 = sbr.rel (%p1207) target = $region100
        $region99: #{tpu_custom_call.1} parent=42 // pred_region
          %s1210 = smul.u32 5, %s22
          %s1211 = scalar_lea.vmem %s4, %s1210
          // Predicated region
          $region101: #{tpu_custom_call.1} parent=99 // pred_check
            _
          $region102: #{tpu_custom_call.1} parent=99 // pred_check_branch
            %1213 = sbr.rel (0) target = $region104
          $region103: #{tpu_custom_call.1} parent=99 // pred_region
            // Predicated region
            $region105: #{tpu_custom_call.1} parent=103 // pred_check
              _
            $region106: #{tpu_custom_call.1} parent=103 // pred_check_branch
              %1215 = sbr.rel target = $region108
            $region107: #{tpu_custom_call.1} parent=103 // pred_region
              // Predicated region
              $region120: #{tpu_custom_call.1} parent=107 // pred_check
                _
              $region121: #{tpu_custom_call.1} parent=107 // pred_check_branch
                %1233 = sbr.rel (0) target = $region123
              $region122: #{tpu_custom_call.1} parent=107 // pred_region
                loop: start=0, step=1, limit=1
                $region124: #{tpu_custom_call.1} parent=122 // loop_pre_header
                  _
                $region125: #{tpu_custom_call.1} parent=122 // loop_header
                  %s1235 = sphi 0, %s1239
                  %p1236 = scmp.ge.s32.totalorder %s1235, 1
                  %s1240 = sphi %s1124, %s1124
                  %s1241 = sphi %s1211, %s1211
                $region126: #{tpu_custom_call.1} parent=122 // loop_header_branch
                  %1238 = sbr.rel (%p1236) target = $region130
                $region127: #{tpu_custom_call.1} parent=122 // loop_body
                  _
                $region128: #{tpu_custom_call.1} parent=122 // loop_footer
                  %s1239 = sadd.s32 1, %s1235
                $region129: #{tpu_custom_call.1} parent=122 // loop_footer_branch
                  %1234 = sbr.rel target = $region125
                $region130: #{tpu_custom_call.1} parent=122 // loop_exit
                  _
                %s1243 = ssub.s32 32, 1
                loop: start=0, step=1, limit=1
                $region131: #{tpu_custom_call.1} parent=122 // loop_pre_header
                  _
                $region132: #{tpu_custom_call.1} parent=122 // loop_header
                  %s1245 = sphi 0, %s1249
                  %p1246 = scmp.ge.s32.totalorder %s1245, 1
                  %s1250 = sphi %s1124, %s1124
                  %s1251 = sphi %s1211, %s1211
                $region133: #{tpu_custom_call.1} parent=122 // loop_header_branch
                  %1248 = sbr.rel (%p1246) target = $region137
                $region134: #{tpu_custom_call.1} parent=122 // loop_body
                  %v1252 = vld [vmem:[%s1250] sm:%s1243]
                  %1253 = vst [vmem:[%s1251] sm:%s1243] %v1252
                  %v1254 = vld [vmem:[%s1250 + $0x5] sm:%s1243]
                  %1255 = vst [vmem:[%s1251 + $0xa] sm:%s1243] %v1254
                $region135: #{tpu_custom_call.1} parent=122 // loop_footer
                  %s1249 = sadd.s32 1, %s1245
                $region136: #{tpu_custom_call.1} parent=122 // loop_footer_branch
                  %1244 = sbr.rel target = $region132
                $region137: #{tpu_custom_call.1} parent=122 // loop_exit
                  _
              $region123: #{tpu_custom_call.1} parent=107 // pred_fallthru
                _
            $region108: #{tpu_custom_call.1} parent=103 // pred_fallthru
              _
            // Predicated region
            $region109: #{tpu_custom_call.1} parent=103 // pred_check
              _
            $region110: #{tpu_custom_call.1} parent=103 // pred_check_branch
              %1217 = sbr.rel (0) target = $region112
            $region111: #{tpu_custom_call.1} parent=103 // pred_region
              %s1219 = ssub.s32 32, 1
              loop: start=0, step=1, limit=1
              $region113: #{tpu_custom_call.1} parent=111 // loop_pre_header
                _
              $region114: #{tpu_custom_call.1} parent=111 // loop_header
                %s1221 = sphi 0, %s1225
                %p1222 = scmp.ge.s32.totalorder %s1221, 1
                %s1226 = sphi %s1124, %s1124
                %s1227 = sphi %s1211, %s1211
              $region115: #{tpu_custom_call.1} parent=111 // loop_header_branch
                %1224 = sbr.rel (%p1222) target = $region119
              $region116: #{tpu_custom_call.1} parent=111 // loop_body
                %v1228 = vld [vmem:[%s1226] sm:%s1219]
                %1229 = vst [vmem:[%s1227] sm:%s1219] %v1228
                %v1230 = vld [vmem:[%s1226 + $0x5] sm:%s1219]
                %1231 = vst [vmem:[%s1227 + $0xa] sm:%s1219] %v1230
              $region117: #{tpu_custom_call.1} parent=111 // loop_footer
                %s1225 = sadd.s32 1, %s1221
              $region118: #{tpu_custom_call.1} parent=111 // loop_footer_branch
                %1220 = sbr.rel target = $region114
              $region119: #{tpu_custom_call.1} parent=111 // loop_exit
                _
            $region112: #{tpu_custom_call.1} parent=103 // pred_fallthru
              _
          $region104: #{tpu_custom_call.1} parent=99 // pred_fallthru
            _
          %1256 = vnop
        $region100: #{tpu_custom_call.1} parent=42 // pred_fallthru
          _
      $region43: #{tpu_custom_call.1} parent=5 // pred_fallthru
        _
      %p1257 = scmp.le.s32.totalorder 2, %s17
      // Predicated region
      $region138: #{tpu_custom_call.1} parent=5 // pred_check
        %p1258 = pneg %p1257
      $region139: #{tpu_custom_call.1} parent=5 // pred_check_branch
        %1260 = sbr.rel (%p1258) target = $region141
      $region140: #{tpu_custom_call.1} parent=5 // pred_region
        %s1261 = ssub.s32 %s17, 2
        // Predicated region
        $region142: #{tpu_custom_call.1} parent=140 // pred_check
          %p1262 = pneg %p72
        $region143: #{tpu_custom_call.1} parent=140 // pred_check_branch
          %1264 = sbr.rel (%p1262) target = $region145
        $region144: #{tpu_custom_call.1} parent=140 // pred_region
          %s1265 = sand.u32 %s57, 1
          %s1266 = scalar_lea.sflag [#allocation4], %s1265
          %s1267 = sand.u32 %s57, 1
          %s1268 = smul.addr %s1267, 10
          %s1269 = scalar_lea.vmem [#allocation3], %s1268
          %1270 = dma.done %s1266, 160
        $region145: #{tpu_custom_call.1} parent=140 // pred_fallthru
          _
        // Predicated region
        $region146: #{tpu_custom_call.1} parent=140 // pred_check
          %p1271 = pneg %p98
        $region147: #{tpu_custom_call.1} parent=140 // pred_check_branch
          %1273 = sbr.rel (%p1271) target = $region149
        $region148: #{tpu_custom_call.1} parent=140 // pred_region
          %s1274 = sand.u32 %s83, 1
          %s1275 = scalar_lea.sflag [#allocation6], %s1274
          %s1276 = sand.u32 %s83, 1
          %s1277 = smul.addr %s1276, 10
          %s1278 = scalar_lea.vmem [#allocation5], %s1277
          %1279 = dma.done %s1275, 160
        $region149: #{tpu_custom_call.1} parent=140 // pred_fallthru
          _
        // Predicated region
        $region150: #{tpu_custom_call.1} parent=140 // pred_check
          %p1280 = pneg %p124
        $region151: #{tpu_custom_call.1} parent=140 // pred_check_branch
          %1282 = sbr.rel (%p1280) target = $region153
        $region152: #{tpu_custom_call.1} parent=140 // pred_region
          %s1283 = sand.u32 %s109, 1
          %s1284 = sand.u32 %s109, 1
          %s1285 = smul.addr %s1284, 10
          %s1286 = scalar_lea.vmem [#allocation7], %s1285
        $region153: #{tpu_custom_call.1} parent=140 // pred_fallthru
          _
        // Predicated region
        $region154: #{tpu_custom_call.1} parent=140 // pred_check
          %p1287 = pneg %p150
        $region155: #{tpu_custom_call.1} parent=140 // pred_check_branch
          %1289 = sbr.rel (%p1287) target = $region157
        $region156: #{tpu_custom_call.1} parent=140 // pred_region
          %s1290 = sand.u32 %s135, 1
          %s1291 = sand.u32 %s135, 1
          %s1292 = smul.addr %s1291, 10
          %s1293 = scalar_lea.vmem [#allocation8], %s1292
        $region157: #{tpu_custom_call.1} parent=140 // pred_fallthru
          _
      $region141: #{tpu_custom_call.1} parent=5 // pred_fallthru
        _
    $region6: #{tpu_custom_call.1} parent=1 // loop_footer
      %s21 = sadd.s32 1, %s17
    $region7: #{tpu_custom_call.1} parent=1 // loop_footer_branch
      %16 = sbr.rel target = $region3
    $region8: #{tpu_custom_call.1} parent=1 // loop_exit
      _
    %1294 = vsyncpa [#allocation4], 1
    %s1295 = scalar_lea.sflag [#allocation4], 1
    %1296 = vsyncpa %s1295, 1
    %1297 = vsyncpa [#allocation6], 1
    %s1298 = scalar_lea.sflag [#allocation6], 1
    %1299 = vsyncpa %s1298, 1

</llo_original>
